<compile_context>
chip_gen: v7x
topology: tpu7x:2x2x1
jax: 0.10.0
libtpu: 0.0.40
codegen_flags: <defaults>
</compile_context>

<pallas_src>
import functools

import numpy as np
import jax
import jax.numpy as jnp
from jax import lax
from jax.experimental import pallas as pl
from jax.experimental.pallas import tpu as pltpu

_LANES = 128  # TPU vreg lane width


def _round_up(x: int, m: int) -> int:
    return ((x + m - 1) // m) * m


def _largest_divisor_leq(n: int, cap: int) -> int:
    for d in range(min(n, cap), 0, -1):
        if n % d == 0:
            return d
    return 1


def _vmem_capacity_bytes() -> int:
    """Generation-aware VMEM capacity; falls back to the v7x 64 MiB/TC."""
    try:
        info = pltpu.get_tpu_info()
        for attr in ("vmem_capacity_bytes", "vmem_size_bytes", "vmem_bytes"):
            cap = getattr(info, attr, None)
            if cap:
                return int(cap)
    except Exception:
        pass
    return 64 * 1024 * 1024


# ---------------------------------------------------------------------------
# Kernels
# ---------------------------------------------------------------------------
def _sdpa_single_kv_kernel(q_ref, k_ref, v_ref, o_ref, *, inv_sqrt_dim):
    """Single KV tile: exact one-pass softmax (no online-softmax overhead)."""
    s = jnp.einsum("bqd,bkd->bqk", q_ref[...], k_ref[...],
                   preferred_element_type=jnp.float32) * inv_sqrt_dim
    m = jnp.max(s, axis=-1, keepdims=True)
    p = jnp.exp(s - m)
    l = jnp.sum(p, axis=-1, keepdims=True)
    ctx = jnp.einsum("bqk,bkd->bqd", p.astype(v_ref.dtype), v_ref[...],
                     preferred_element_type=jnp.float32)
    o_ref[...] = (ctx * pl.reciprocal(l, approx=False)).astype(o_ref.dtype)


def _flash_sdpa_kernel(q_ref, k_ref, v_ref, o_ref,
                       qs_sc, s_sc, m_sc, l_sc, acc_sc, *,
                       inv_sqrt_dim, tk, lk_valid, needs_kv_mask, d_blk):
    """One (batch-tile, q-tile, kv-tile) step of flash attention."""
    ki = pl.program_id(2)
    last_kv = pl.num_programs(2) - 1

    @pl.when(ki == 0)
    def _init():
        # Fold 1/sqrt(d) into Q once per (b, q-tile) block, in Q's native
        # dtype (tiny rounding cost for bf16, exact for f32), instead of
        # scaling the (Bt,tq,tk) score tensor on every kv step.
        qs_sc[...] = q_ref[...] * inv_sqrt_dim
        m_sc[...] = jnp.full_like(m_sc, -jnp.inf)
        l_sc[...] = jnp.zeros_like(l_sc)
        acc_sc[...] = jnp.zeros_like(acc_sc)

    if needs_kv_mask:
        # Stage scores through VMEM so the padded-column mask can be applied
        # only on the last KV tile (the only tile that can contain padding);
        # all earlier steps pay zero mask cost.
        s_sc[...] = jnp.einsum("bqd,bkd->bqk", qs_sc[...], k_ref[...],
                               preferred_element_type=jnp.float32)

        @pl.when(ki == last_kv)
        def _mask_last_tile():
            col = lax.broadcasted_iota(jnp.int32, s_sc.shape, 2)
            s_sc[...] = jnp.where(col < lk_valid - ki * tk, s_sc[...],
                                  jnp.float32(-1e30))

        s = s_sc[...]
    else:
        s = jnp.einsum("bqd,bkd->bqk", qs_sc[...], k_ref[...],
                       preferred_element_type=jnp.float32)

    # Online softmax. m/l scratch are lane-replicated (last dim = 128) so
    # their read-modify-writes are full-lane stores.
    m_prev = m_sc[...]
    l_prev = l_sc[...]
    m_cur = jnp.max(s, axis=-1, keepdims=True)
    m_next = jnp.maximum(m_prev, m_cur)
    alpha = jnp.exp(m_prev - m_next)
    p = jnp.exp(s - m_next[..., :1])

    l_sc[...] = alpha * l_prev + jnp.sum(p, axis=-1, keepdims=True)
    alpha_b = alpha if d_blk == _LANES else alpha[..., :1]
    acc_sc[...] = alpha_b * acc_sc[...] + jnp.einsum(
        "bqk,bkd->bqd", p.astype(v_ref.dtype), v_ref[...],
        preferred_element_type=jnp.float32)
    m_sc[...] = m_next

    @pl.when(ki == last_kv)
    def _finalize():
        l = l_sc[...] if d_blk == _LANES else l_sc[..., :1]
        o_ref[...] = (acc_sc[...] * pl.reciprocal(l, approx=False)
                      ).astype(o_ref.dtype)


# ---------------------------------------------------------------------------
# Wrapper
# ---------------------------------------------------------------------------
def _choose_config(B, Lq, Lk, D, itemsize):
    vmem_cap = _vmem_capacity_bytes()
    big_vmem = vmem_cap >= 100 * 1024 * 1024       # v5e/v6e: 128 MiB, v7x: 64 MiB
    pack = {2: 16, 1: 32}.get(itemsize, 8)         # sublane packing per dtype

    # Feature dim: keep unpadded when small (block last dim == full array dim
    # is legal) or already lane aligned; only pad large, misaligned D.
    d_blk = D if (D <= _LANES or D % _LANES == 0) else _round_up(D, _LANES)

    tq_cap = 512 if big_vmem else 256
    tk_cap = 512 if big_vmem else 256

    # Q tiling: full (unpadded) block when it fits; otherwise the smallest
    # pack-aligned tile for the minimal step count (minimizes pad waste).
    if Lq <= tq_cap:
        tq, lq_pad = Lq, Lq
    else:
        n_q = -(-Lq // tq_cap)
        tq = _round_up(-(-Lq // n_q), pack)
        lq_pad = n_q * tq

    # KV tiling: one full tile when it fits (no padding, no mask, single-pass
    # softmax); otherwise 128-aligned tiles (lane-dense scores, full-width
    # p @ V contraction) sized to minimize padding.
    if Lk <= tk_cap:
        tk, lk_pad, num_kv = Lk, Lk, 1
    else:
        num_kv = -(-Lk // tk_cap)
        tk = _round_up(-(-Lk // num_kv), _LANES)
        lk_pad = num_kv * tk

    # Batch rows folded per step: amortize per-step overhead for short
    # sequences while keeping ~tq_cap q rows of work per step. bt divides B so
    # the batch axis is never padded. Shrink for wide heads on v7x-sized VMEM.
    bt_cap = max(1, tq_cap // tq)
    if not big_vmem and d_blk >= 256:
        bt_cap = max(1, bt_cap // 2)
    bt = _largest_divisor_leq(B, min(bt_cap, 8))

    buf_depth = 3 if big_vmem else 2               # deeper K/V streaming on v5e/v6e
    vmem_limit = max(32 * 1024 * 1024, int(vmem_cap * 0.7))
    return d_blk, tq, lq_pad, tk, lk_pad, num_kv, bt, buf_depth, vmem_limit


def scaled_dot_product_attention(query, key, value):
    """query: (B, Lq, D), key/value: (B, Lk, D)  ->  context (B, Lq, D)."""
    B, Lq, D = query.shape
    Bk, Lk, Dk = key.shape
    assert Bk == B and Dk == D and value.shape == (B, Lk, D)

    inv_sqrt_dim = 1.0 / float(np.sqrt(D))
    itemsize = jnp.dtype(query.dtype).itemsize
    (d_blk, tq, lq_pad, tk, lk_pad, num_kv, bt, buf_depth,
     vmem_limit) = _choose_config(B, Lq, Lk, D, itemsize)

    num_b = B // bt
    num_q = lq_pad // tq

    def _pad_to(x, shape):
        pads = tuple((0, t - s) for s, t in zip(x.shape, shape))
        return jnp.pad(x, pads) if any(p for _, p in pads) else x

    qp = _pad_to(query, (B, lq_pad, d_blk))

    if num_kv == 1:
        # --- single-KV-tile fast path (the module's real shapes) -----------
        kp = _pad_to(key, (B, Lk, d_blk))
        vp = _pad_to(value, (B, Lk, d_blk))
        kernel = functools.partial(_sdpa_single_kv_kernel,
                                   inv_sqrt_dim=inv_sqrt_dim)
        out = pl.pallas_call(
            kernel,
            out_shape=jax.ShapeDtypeStruct((B, lq_pad, d_blk), query.dtype),
            grid_spec=pltpu.PrefetchScalarGridSpec(
                num_scalar_prefetch=0,
                grid=(num_b, num_q),
                in_specs=[
                    pl.BlockSpec((bt, tq, d_blk), lambda b, qi: (b, qi, 0)),
                    pl.BlockSpec((bt, Lk, d_blk), lambda b, qi: (b, 0, 0)),
                    pl.BlockSpec((bt, Lk, d_blk), lambda b, qi: (b, 0, 0)),
                ],
                out_specs=pl.BlockSpec((bt, tq, d_blk),
                                       lambda b, qi: (b, qi, 0)),
            ),
            compiler_params=pltpu.CompilerParams(
                dimension_semantics=("parallel", "parallel"),
                vmem_limit_bytes=vmem_limit),
        )(qp, kp, vp)
    else:
        # --- flash (online-softmax) path for long Lk ------------------------
        needs_kv_mask = lk_pad != Lk
        kp = _pad_to(key, (B, lk_pad, d_blk))
        vp = _pad_to(value, (B, lk_pad, d_blk))

        kv_kwargs = {}
        if buf_depth > 2 and num_kv >= buf_depth:
            kv_kwargs = dict(pipeline_mode=pl.Buffered(buf_depth))
        k_spec = pl.BlockSpec((bt, tk, d_blk), lambda b, qi, ki: (b, ki, 0),
                              **kv_kwargs)
        v_spec = pl.BlockSpec((bt, tk, d_blk), lambda b, qi, ki: (b, ki, 0),
                              **kv_kwargs)

        kernel = functools.partial(
            _flash_sdpa_kernel, inv_sqrt_dim=inv_sqrt_dim, tk=tk,
            lk_valid=Lk, needs_kv_mask=needs_kv_mask, d_blk=d_blk)

        out = pl.pallas_call(
            kernel,
            out_shape=jax.ShapeDtypeStruct((B, lq_pad, d_blk), query.dtype),
            grid_spec=pltpu.PrefetchScalarGridSpec(
                num_scalar_prefetch=0,
                grid=(num_b, num_q, num_kv),
                in_specs=[
                    # Q / output stay resident across the KV (reduction) axis.
                    pl.BlockSpec((bt, tq, d_blk), lambda b, qi, ki: (b, qi, 0)),
                    k_spec,
                    v_spec,
                ],
                out_specs=pl.BlockSpec((bt, tq, d_blk),
                                       lambda b, qi, ki: (b, qi, 0)),
                scratch_shapes=[
                    pltpu.VMEM((bt, tq, d_blk), query.dtype),    # scaled Q
                    pltpu.VMEM((bt, tq, tk), jnp.float32),       # staged scores
                    pltpu.VMEM((bt, tq, _LANES), jnp.float32),   # running max
                    pltpu.VMEM((bt, tq, _LANES), jnp.float32),   # running denom
                    pltpu.VMEM((bt, tq, d_blk), jnp.float32),    # f32 accumulator
                ],
            ),
            compiler_params=pltpu.CompilerParams(
                dimension_semantics=("parallel", "parallel", "arbitrary"),
                vmem_limit_bytes=vmem_limit),
        )(qp, kp, vp)

    if out.shape != (B, Lq, D):
        out = out[:, :Lq, :D]
    return out


def _reference_sdpa(query, key, value):
    # Plain-JAX reference mirroring the PyTorch forward exactly.
    d = query.shape[-1]
    score = jnp.einsum("bqd,bkd->bqk", query, key) / np.sqrt(d)
    attn = jax.nn.softmax(score, axis=-1)
    return jnp.einsum("bqk,bkd->bqd", attn, value)


if __name__ == "__main__":
    keys = jax.random.split(jax.random.PRNGKey(0), 6)

    # (1) Module-sized inputs (batch=2, seq=8, d_model=32): single-KV-tile
    #     fast path, unpadded D, no online-softmax overhead.
    B, L, D = 2, 8, 32
    q = jax.random.normal(keys[0], (B, L, D), dtype=jnp.float32)
    k = jax.random.normal(keys[1], (B, L, D), dtype=jnp.float32)
    v = jax.random.normal(keys[2], (B, L, D), dtype=jnp.float32)
    out = jax.block_until_ready(scaled_dot_product_attention(q, k, v))
    np.testing.assert_allclose(np.asarray(out),
                               np.asarray(_reference_sdpa(q, k, v)),
                               rtol=1e-2, atol=1e-2)

    # (2) Longer sequences: exercises the multi-KV-tile flash path, the
    #     last-tile-only padded-KV masking and the q-tile padding path.
    B2, L2, D2 = 2, 600, 32
    q2 = jax.random.normal(keys[3], (B2, L2, D2), dtype=jnp.float32)
    k2 = jax.random.normal(keys[4], (B2, L2, D2), dtype=jnp.float32)
    v2 = jax.random.normal(keys[5], (B2, L2, D2), dtype=jnp.float32)
    out2 = jax.block_until_ready(scaled_dot_product_attention(q2, k2, v2))
    np.testing.assert_allclose(np.asarray(out2),
                               np.asarray(_reference_sdpa(q2, k2, v2)),
                               rtol=1e-2, atol=1e-2)

    print("KERNEL_OK")
</pallas_src>

<mosaic_0001>
module attributes {stable_mosaic.version = 11 : i64} {
  func.func @_sdpa_single_kv_kernel(%arg0: i32, %arg1: i32, %arg2: memref<2x8x32xf32, #tpu.memory_space<vmem>>, %arg3: memref<2x8x32xf32, #tpu.memory_space<vmem>>, %arg4: memref<2x8x32xf32, #tpu.memory_space<vmem>>, %arg5: memref<2x8x32xf32, #tpu.memory_space<vmem>>) attributes {dimension_semantics = [#tpu.dimension_semantics<parallel>, #tpu.dimension_semantics<parallel>], iteration_bounds = array<i64: 1, 1>, scalar_prefetch = 0 : i64, scratch_operands = 0 : i64, tpu.core_type = #tpu.core_type<tc>, window_params = [{transform_indices = @transform_0, window_bounds = array<i64: 2, 8, 32>}, {transform_indices = @transform_1, window_bounds = array<i64: 2, 8, 32>}, {transform_indices = @transform_2, window_bounds = array<i64: 2, 8, 32>}, {transform_indices = @transform_3, window_bounds = array<i64: 2, 8, 32>}]} {
    %c0 = arith.constant 0 : index
    %c0_0 = arith.constant 0 : index
    %c0_1 = arith.constant 0 : index
    %0 = vector.load %arg2[%c0, %c0_0, %c0_1] : memref<2x8x32xf32, #tpu.memory_space<vmem>>, vector<2x8x32xf32>
    %c0_2 = arith.constant 0 : index
    %c0_3 = arith.constant 0 : index
    %c0_4 = arith.constant 0 : index
    %1 = vector.load %arg3[%c0_2, %c0_3, %c0_4] : memref<2x8x32xf32, #tpu.memory_space<vmem>>, vector<2x8x32xf32>
    "tpu.trace_start"() <{level = 10 : i32, message = "bqd,bkd->bqk"}> : () -> ()
    %cst = arith.constant dense<0.000000e+00> : vector<2x8x8xf32>
    %2 = tpu.matmul %0, %1, %cst {dimension_numbers = #tpu.dot_dimension_numbers<[2], [2], [1], [1], [0, 0, 0, 1, 1, 1], [0], [0]>} : vector<2x8x32xf32>, vector<2x8x32xf32>, vector<2x8x8xf32> -> vector<2x8x8xf32>
    "tpu.trace_stop"() : () -> ()
    %cst_5 = arith.constant 0.176776692 : f32
    %3 = vector.broadcast %cst_5 : f32 to vector<2x8x8xf32>
    %4 = arith.mulf %2, %3 : vector<2x8x8xf32>
    %cst_6 = arith.constant dense<0xFF800000> : vector<2x8xf32>
    %5 = vector.multi_reduction <maximumf>, %4, %cst_6 [2] : vector<2x8x8xf32> to vector<2x8xf32>
    %6 = vector.shape_cast %5 : vector<2x8xf32> to vector<2x8x1xf32>
    %7 = vector.broadcast %6 : vector<2x8x1xf32> to vector<2x8x8xf32>
    %8 = arith.subf %4, %7 : vector<2x8x8xf32>
    %9 = math.exp %8 : vector<2x8x8xf32>
    %cst_7 = arith.constant dense<0.000000e+00> : vector<2x8xf32>
    %10 = vector.multi_reduction <add>, %9, %cst_7 [2] : vector<2x8x8xf32> to vector<2x8xf32>
    %11 = vector.shape_cast %10 : vector<2x8xf32> to vector<2x8x1xf32>
    %c0_8 = arith.constant 0 : index
    %c0_9 = arith.constant 0 : index
    %c0_10 = arith.constant 0 : index
    %12 = vector.load %arg4[%c0_8, %c0_9, %c0_10] : memref<2x8x32xf32, #tpu.memory_space<vmem>>, vector<2x8x32xf32>
    "tpu.trace_start"() <{level = 10 : i32, message = "bqk,bkd->bqd"}> : () -> ()
    %cst_11 = arith.constant dense<0.000000e+00> : vector<2x8x32xf32>
    %13 = tpu.matmul %9, %12, %cst_11 {dimension_numbers = #tpu.dot_dimension_numbers<[2], [1], [1], [2], [0, 0, 0, 1, 1, 2], [0], [0]>} : vector<2x8x8xf32>, vector<2x8x32xf32>, vector<2x8x32xf32> -> vector<2x8x32xf32>
    "tpu.trace_stop"() : () -> ()
    %14 = tpu.reciprocal %11 : vector<2x8x1xf32> -> vector<2x8x1xf32>
    %15 = vector.broadcast %14 : vector<2x8x1xf32> to vector<2x8x32xf32>
    %16 = arith.mulf %13, %15 : vector<2x8x32xf32>
    %c0_12 = arith.constant 0 : index
    %c0_13 = arith.constant 0 : index
    %c0_14 = arith.constant 0 : index
    %17 = vector.load %arg5[%c0_12, %c0_13, %c0_14] : memref<2x8x32xf32, #tpu.memory_space<vmem>>, vector<2x8x32xf32>
    tpu.vector_store %arg5[%c0_12, %c0_13, %c0_14], %16 {strides = array<i32>} : memref<2x8x32xf32, #tpu.memory_space<vmem>>, vector<2x8x32xf32>,
    return
  }
  func.func @transform_0(%arg0: i32, %arg1: i32) -> (i32, i32, i32) {
    %c0_i32 = arith.constant 0 : i32
    %c0_i32_0 = arith.constant 0 : i32
    return %arg0, %arg1, %c0_i32 : i32, i32, i32
  }
  func.func @transform_1(%arg0: i32, %arg1: i32) -> (i32, i32, i32) {
    %c0_i32 = arith.constant 0 : i32
    %c0_i32_0 = arith.constant 0 : i32
    %c0_i32_1 = arith.constant 0 : i32
    return %arg0, %c0_i32, %c0_i32_0 : i32, i32, i32
  }
  func.func @transform_2(%arg0: i32, %arg1: i32) -> (i32, i32, i32) {
    %c0_i32 = arith.constant 0 : i32
    %c0_i32_0 = arith.constant 0 : i32
    %c0_i32_1 = arith.constant 0 : i32
    return %arg0, %c0_i32, %c0_i32_0 : i32, i32, i32
  }
  func.func @transform_3(%arg0: i32, %arg1: i32) -> (i32, i32, i32) {
    %c0_i32 = arith.constant 0 : i32
    %c0_i32_0 = arith.constant 0 : i32
    return %arg0, %arg1, %c0_i32 : i32, i32, i32
  }
}

</mosaic_0001>

<llo_original>
// kernel: tpu_custom_call.1
$region0: #{tpu_custom_call.1}
  #allocation0 [shape = 'u32[]', space=smem, size = 0x4, offset = 0x4, fixed_abs, tag = 'smem constant byte address 0x4 - core index']
  #allocation1 [shape = 'u32[144,128]{1,0:T(1,128)}', space=vmem, size = 0x12000, scoped, tag = 'internal scratch']
  %s0 = inlined_call_operand.hbm [shape: f32[2,8,32], index: 0, kind: input, shape index: {}]
  %s1 = inlined_call_operand.hbm [shape: f32[2,8,32], index: 1, kind: input, shape index: {}]
  %s2 = inlined_call_operand.hbm [shape: f32[2,8,32], index: 2, kind: input, shape index: {}]
  %s3 = inlined_call_operand.hbm [shape: f32[2,8,32], index: 3, kind: output, shape index: {}]
  %s4 = sld [smem:[#allocation0]]
  $region34: #{tpu_custom_call.1} parent=0
    _
  %s6 = ssub.s32 1, %s4
  %s7 = scalar_select 0, %s6, %s4
  $region1: #{tpu_custom_call.1} parent=0
    #allocation2 [shape = 'u8[8192]{0}', space=vmem, size = 0x2000, scoped, tag = 'input window, operand 0, single buffered']
    #allocation3 [shape = 's32[1]{0}', space=sflag, size = 0x4, scoped, tag = 'scoped memory for tpu_custom_call.1']
    #allocation4 [shape = 's32[1]{0}', space=sflag, size = 0x4, scoped, tag = 'scoped memory for tpu_custom_call.1']
    #allocation5 [shape = 'u8[8192]{0}', space=vmem, size = 0x2000, scoped, tag = 'input window, operand 1, single buffered']
    #allocation6 [shape = 's32[1]{0}', space=sflag, size = 0x4, scoped, tag = 'scoped memory for tpu_custom_call.1']
    #allocation7 [shape = 'u8[8192]{0}', space=vmem, size = 0x2000, scoped, tag = 'input window, operand 2, single buffered']
    #allocation8 [shape = 'u8[8192]{0}', space=vmem, size = 0x2000, scoped, tag = 'output window, operand 0, single buffered']
    %8 = vsyncpa [#allocation3], 0
    %9 = vsyncpa [#allocation6], 0
    %10 = vsyncpa [#allocation4], 0
    // Predicated region
    $region2: #{tpu_custom_call.1} parent=1 // pred_check
      _
    $region3: #{tpu_custom_call.1} parent=1 // pred_check_branch
      %12 = sbr.rel (0) target = $region5
    $region4: #{tpu_custom_call.1} parent=1 // pred_region
      %s14 = ssub.s32 256, 256
      %15 = vsyncadd [#allocation3], %s14
      %s16 = sshll.u32 [#allocation2], 4
      %s17 = int_to_ptr.vmem [resolvable:$true] %s16
      %22 = dma.hbm_to_vmem [thread:$0]  %s0, 256, %s17, [#allocation3], 128, 128, 8
    $region5: #{tpu_custom_call.1} parent=1 // pred_fallthru
      _
    // Predicated region
    $region6: #{tpu_custom_call.1} parent=1 // pred_check
      _
    $region7: #{tpu_custom_call.1} parent=1 // pred_check_branch
      %24 = sbr.rel (0) target = $region9
    $region8: #{tpu_custom_call.1} parent=1 // pred_region
      %s26 = ssub.s32 256, 256
      %27 = vsyncadd [#allocation6], %s26
      %s28 = sshll.u32 [#allocation5], 4
      %s29 = int_to_ptr.vmem [resolvable:$true] %s28
      %34 = dma.hbm_to_vmem [thread:$0]  %s1, 256, %s29, [#allocation6], 128, 128, 8
    $region9: #{tpu_custom_call.1} parent=1 // pred_fallthru
      _
    // Predicated region
    $region10: #{tpu_custom_call.1} parent=1 // pred_check
      _
    $region11: #{tpu_custom_call.1} parent=1 // pred_check_branch
      %36 = sbr.rel (0) target = $region13
    $region12: #{tpu_custom_call.1} parent=1 // pred_region
      %s38 = ssub.s32 256, 256
      %39 = vsyncadd [#allocation6], %s38
      %s40 = sshll.u32 [#allocation7], 4
      %s41 = int_to_ptr.vmem [resolvable:$true] %s40
      %46 = dma.hbm_to_vmem [thread:$0]  %s2, 256, %s41, [#allocation6], 128, 128, 8
    $region13: #{tpu_custom_call.1} parent=1 // pred_fallthru
      _
    // Predicated region
    $region14: #{tpu_custom_call.1} parent=1 // pred_check
      _
    $region15: #{tpu_custom_call.1} parent=1 // pred_check_branch
      %48 = sbr.rel (0) target = $region17
    $region16: #{tpu_custom_call.1} parent=1 // pred_region
      %49 = dma.done [#allocation3], 256
    $region17: #{tpu_custom_call.1} parent=1 // pred_fallthru
      _
    // Predicated region
    $region18: #{tpu_custom_call.1} parent=1 // pred_check
      _
    $region19: #{tpu_custom_call.1} parent=1 // pred_check_branch
      %51 = sbr.rel (0) target = $region21
    $region20: #{tpu_custom_call.1} parent=1 // pred_region
      %52 = dma.done [#allocation6], 256
    $region21: #{tpu_custom_call.1} parent=1 // pred_fallthru
      _
    // Predicated region
    $region22: #{tpu_custom_call.1} parent=1 // pred_check
      _
    $region23: #{tpu_custom_call.1} parent=1 // pred_check_branch
      %54 = sbr.rel (0) target = $region25
    $region24: #{tpu_custom_call.1} parent=1 // pred_region
      %55 = dma.done [#allocation6], 256
    $region25: #{tpu_custom_call.1} parent=1 // pred_fallthru
      _
    %v56 = vld [vmem:[#allocation2] sm:$0xff]
    %v57 = vld [vmem:[#allocation2 + $0x8] sm:$0xff]
    %v58 = vld [vmem:[#allocation5] sm:$0xff]
    %v59 = vld [vmem:[#allocation5 + $0x8] sm:$0xff]
    %vm60 = vcmask 261120
    %v62 = vsel %vm60, %v56, 0
    %v65 = vsel %vm60, %v58, 0
    %67 = vmatprep.subr.mxu0 0.0
    %68 = vmatpush1.xpose.msra.mxu0 %v65
    %69 = vmatprep.subr.mxu0 0.0
    %70 = vmatpush1.xpose.msra.mxu0 0.0
    %71 = vmatprep.subr.mxu0 0.0
    %72 = vmatpush1.xpose.msra.mxu0 0.0
    %73 = vmatprep.subr.mxu0 0.0
    %74 = vmatpush1.xpose.msra.mxu0 0.0
    %75 = vmatprep.subr.mxu0 0.0
    %76 = vmatpush1.xpose.msra.mxu0 0.0
    %77 = vmatprep.subr.mxu0 0.0
    %78 = vmatpush1.xpose.msra.mxu0 0.0
    %79 = vmatprep.subr.mxu0 0.0
    %80 = vmatpush1.xpose.msra.mxu0 0.0
    %81 = vmatprep.subr.mxu0 0.0
    %82 = vmatpush1.xpose.msra.mxu0 0.0
    %83 = vmatprep.subr.mxu0 0.0
    %84 = vmatpush1.xpose.msra.mxu0 0.0
    %85 = vmatprep.subr.mxu0 0.0
    %86 = vmatpush1.xpose.msra.mxu0 0.0
    %87 = vmatprep.subr.mxu0 0.0
    %88 = vmatpush1.xpose.msra.mxu0 0.0
    %89 = vmatprep.subr.mxu0 0.0
    %90 = vmatpush1.xpose.msra.mxu0 0.0
    %91 = vmatprep.subr.mxu0 0.0
    %92 = vmatpush1.xpose.msra.mxu0 0.0
    %93 = vmatprep.subr.mxu0 0.0
    %94 = vmatpush1.xpose.msra.mxu0 0.0
    %95 = vmatprep.subr.mxu0 0.0
    %96 = vmatpush1.xpose.msra.mxu0 0.0
    %97 = vmatprep.subr.mxu0 0.0
    %98 = vmatpush1.xpose.msra.mxu0 0.0
    %99 = vmatprep.subr.mxu0 0.0
    %100 = vmatpush1.xpose.msra.mxu0 0.0
    %101 = vmatprep.subr.mxu0 0.0
    %102 = vmatpush1.xpose.msra.mxu0 0.0
    %103 = vmatprep.subr.mxu0 0.0
    %104 = vmatpush1.xpose.msra.mxu0 0.0
    %105 = vmatprep.subr.mxu0 0.0
    %106 = vmatpush1.xpose.msra.mxu0 0.0
    %107 = vmatprep.subr.mxu0 0.0
    %108 = vmatpush1.xpose.msra.mxu0 0.0
    %109 = vmatprep.subr.mxu0 0.0
    %110 = vmatpush1.xpose.msra.mxu0 0.0
    %111 = vmatprep.subr.mxu0 0.0
    %112 = vmatpush1.xpose.msra.mxu0 0.0
    %113 = vmatprep.subr.mxu0 0.0
    %114 = vmatpush1.xpose.msra.mxu0 0.0
    %115 = vmatprep.subr.mxu0 0.0
    %116 = vmatpush1.xpose.msra.mxu0 0.0
    %117 = vmatprep.subr.mxu0 0.0
    %118 = vmatpush1.xpose.msra.mxu0 0.0
    %119 = vmatprep.subr.mxu0 0.0
    %120 = vmatpush1.xpose.msra.mxu0 0.0
    %121 = vmatprep.subr.mxu0 0.0
    %122 = vmatpush1.xpose.msra.mxu0 0.0
    %123 = vmatprep.subr.mxu0 0.0
    %124 = vmatpush1.xpose.msra.mxu0 0.0
    %125 = vmatprep.subr.mxu0 0.0
    %126 = vmatpush1.xpose.msra.mxu0 0.0
    %127 = vmatprep.subr.mxu0 0.0
    %128 = vmatpush1.xpose.msra.mxu0 0.0
    %129 = vmatprep.subr.mxu0 0.0
    %130 = vmatpush1.xpose.msra.mxu0 0.0
    %131 = vmatprep.mubr.f32.mxu0 0.0
    %132 = vmatmul.mubr.f32.gmra.mrb[0].mxu0 %v62
    %v133 = vpop.f32.mrb[0].mxu0
    %v134 = vadd.f32 0.0, %v133
    %v135 = vpop.f32.mrb[0].mxu0
    %136 = vdwg.mxu0
    %v138 = vsel %vm60, %v57, 0
    %v141 = vsel %vm60, %v59, 0
    %143 = vmatprep.subr.mxu0 0.0
    %144 = vmatpush1.xpose.msra.mxu0 %v141
    %145 = vmatprep.subr.mxu0 0.0
    %146 = vmatpush1.xpose.msra.mxu0 0.0
    %147 = vmatprep.subr.mxu0 0.0
    %148 = vmatpush1.xpose.msra.mxu0 0.0
    %149 = vmatprep.subr.mxu0 0.0
    %150 = vmatpush1.xpose.msra.mxu0 0.0
    %151 = vmatprep.subr.mxu0 0.0
    %152 = vmatpush1.xpose.msra.mxu0 0.0
    %153 = vmatprep.subr.mxu0 0.0
    %154 = vmatpush1.xpose.msra.mxu0 0.0
    %155 = vmatprep.subr.mxu0 0.0
    %156 = vmatpush1.xpose.msra.mxu0 0.0
    %157 = vmatprep.subr.mxu0 0.0
    %158 = vmatpush1.xpose.msra.mxu0 0.0
    %159 = vmatprep.subr.mxu0 0.0
    %160 = vmatpush1.xpose.msra.mxu0 0.0
    %161 = vmatprep.subr.mxu0 0.0
    %162 = vmatpush1.xpose.msra.mxu0 0.0
    %163 = vmatprep.subr.mxu0 0.0
    %164 = vmatpush1.xpose.msra.mxu0 0.0
    %165 = vmatprep.subr.mxu0 0.0
    %166 = vmatpush1.xpose.msra.mxu0 0.0
    %167 = vmatprep.subr.mxu0 0.0
    %168 = vmatpush1.xpose.msra.mxu0 0.0
    %169 = vmatprep.subr.mxu0 0.0
    %170 = vmatpush1.xpose.msra.mxu0 0.0
    %171 = vmatprep.subr.mxu0 0.0
    %172 = vmatpush1.xpose.msra.mxu0 0.0
    %173 = vmatprep.subr.mxu0 0.0
    %174 = vmatpush1.xpose.msra.mxu0 0.0
    %175 = vmatprep.subr.mxu0 0.0
    %176 = vmatpush1.xpose.msra.mxu0 0.0
    %177 = vmatprep.subr.mxu0 0.0
    %178 = vmatpush1.xpose.msra.mxu0 0.0
    %179 = vmatprep.subr.mxu0 0.0
    %180 = vmatpush1.xpose.msra.mxu0 0.0
    %181 = vmatprep.subr.mxu0 0.0
    %182 = vmatpush1.xpose.msra.mxu0 0.0
    %183 = vmatprep.subr.mxu0 0.0
    %184 = vmatpush1.xpose.msra.mxu0 0.0
    %185 = vmatprep.subr.mxu0 0.0
    %186 = vmatpush1.xpose.msra.mxu0 0.0
    %187 = vmatprep.subr.mxu0 0.0
    %188 = vmatpush1.xpose.msra.mxu0 0.0
    %189 = vmatprep.subr.mxu0 0.0
    %190 = vmatpush1.xpose.msra.mxu0 0.0
    %191 = vmatprep.subr.mxu0 0.0
    %192 = vmatpush1.xpose.msra.mxu0 0.0
    %193 = vmatprep.subr.mxu0 0.0
    %194 = vmatpush1.xpose.msra.mxu0 0.0
    %195 = vmatprep.subr.mxu0 0.0
    %196 = vmatpush1.xpose.msra.mxu0 0.0
    %197 = vmatprep.subr.mxu0 0.0
    %198 = vmatpush1.xpose.msra.mxu0 0.0
    %199 = vmatprep.subr.mxu0 0.0
    %200 = vmatpush1.xpose.msra.mxu0 0.0
    %201 = vmatprep.subr.mxu0 0.0
    %202 = vmatpush1.xpose.msra.mxu0 0.0
    %203 = vmatprep.subr.mxu0 0.0
    %204 = vmatpush1.xpose.msra.mxu0 0.0
    %205 = vmatprep.subr.mxu0 0.0
    %206 = vmatpush1.xpose.msra.mxu0 0.0
    %207 = vmatprep.mubr.f32.mxu0 0.0
    %208 = vmatmul.mubr.f32.gmra.mrb[0].mxu0 %v138
    %v209 = vpop.f32.mrb[0].mxu0
    %v210 = vadd.f32 0.0, %v209
    %v211 = vpop.f32.mrb[0].mxu0
    %212 = vdwg.mxu0
    %v213 = vmul.f32 %v134, 0.17677669
    %v214 = vmul.f32 %v210, 0.17677669
    %vm215 = vcmask 64512
    %v216 = vsel %vm215, %v213, -inf
    %217 = vmax.xlane.f32.xlu0 %v216
    %v218 = vpop.xlane.xlu0 %217
    %v219 = vsel %vm215, %v214, -inf
    %220 = vmax.xlane.f32.xlu0 %v219
    %v221 = vpop.xlane.xlu0 %220
    %v222 = vsub.f32 %v213, %v218
    %v223 = vsub.f32 %v214, %v221
    %v224 = vmul.f32 %v222, 1.442695
    %v225 = vpow.pop %v224
    %v226 = vmul.f32 %v223, 1.442695
    %v227 = vpow.pop %v226
    %v228 = vsel %vm215, %v225, 0.0
    %229 = vadd.xlane.f32.xlu0 %v228
    %v230 = vpop.xlane.xlu0 %229
    %v231 = vsel %vm215, %v227, 0.0
    %232 = vadd.xlane.f32.xlu0 %v231
    %v233 = vpop.xlane.xlu0 %232
    %v234 = vld [vmem:[#allocation7] sm:$0xff]
    %v235 = vld [vmem:[#allocation7 + $0x8] sm:$0xff]
    %v237 = vsel %vm215, %v225, 0
    %239 = vmatprep.subr.mxu0 0.0
    %240 = vmatpush1.msra.mxu0 %v234
    %241 = vmatprep.subr.mxu0 0.0
    %242 = vmatpush1.msra.mxu0 0.0
    %243 = vmatprep.subr.mxu0 0.0
    %244 = vmatpush1.msra.mxu0 0.0
    %245 = vmatprep.subr.mxu0 0.0
    %246 = vmatpush1.msra.mxu0 0.0
    %247 = vmatprep.subr.mxu0 0.0
    %248 = vmatpush1.msra.mxu0 0.0
    %249 = vmatprep.subr.mxu0 0.0
    %250 = vmatpush1.msra.mxu0 0.0
    %251 = vmatprep.subr.mxu0 0.0
    %252 = vmatpush1.msra.mxu0 0.0
    %253 = vmatprep.subr.mxu0 0.0
    %254 = vmatpush1.msra.mxu0 0.0
    %255 = vmatprep.subr.mxu0 0.0
    %256 = vmatpush1.msra.mxu0 0.0
    %257 = vmatprep.subr.mxu0 0.0
    %258 = vmatpush1.msra.mxu0 0.0
    %259 = vmatprep.subr.mxu0 0.0
    %260 = vmatpush1.msra.mxu0 0.0
    %261 = vmatprep.subr.mxu0 0.0
    %262 = vmatpush1.msra.mxu0 0.0
    %263 = vmatprep.subr.mxu0 0.0
    %264 = vmatpush1.msra.mxu0 0.0
    %265 = vmatprep.subr.mxu0 0.0
    %266 = vmatpush1.msra.mxu0 0.0
    %267 = vmatprep.subr.mxu0 0.0
    %268 = vmatpush1.msra.mxu0 0.0
    %269 = vmatprep.subr.mxu0 0.0
    %270 = vmatpush1.msra.mxu0 0.0
    %271 = vmatprep.subr.mxu0 0.0
    %272 = vmatpush1.msra.mxu0 0.0
    %273 = vmatprep.subr.mxu0 0.0
    %274 = vmatpush1.msra.mxu0 0.0
    %275 = vmatprep.subr.mxu0 0.0
    %276 = vmatpush1.msra.mxu0 0.0
    %277 = vmatprep.subr.mxu0 0.0
    %278 = vmatpush1.msra.mxu0 0.0
    %279 = vmatprep.subr.mxu0 0.0
    %280 = vmatpush1.msra.mxu0 0.0
    %281 = vmatprep.subr.mxu0 0.0
    %282 = vmatpush1.msra.mxu0 0.0
    %283 = vmatprep.subr.mxu0 0.0
    %284 = vmatpush1.msra.mxu0 0.0
    %285 = vmatprep.subr.mxu0 0.0
    %286 = vmatpush1.msra.mxu0 0.0
    %287 = vmatprep.subr.mxu0 0.0
    %288 = vmatpush1.msra.mxu0 0.0
    %289 = vmatprep.subr.mxu0 0.0
    %290 = vmatpush1.msra.mxu0 0.0
    %291 = vmatprep.subr.mxu0 0.0
    %292 = vmatpush1.msra.mxu0 0.0
    %293 = vmatprep.subr.mxu0 0.0
    %294 = vmatpush1.msra.mxu0 0.0
    %295 = vmatprep.subr.mxu0 0.0
    %296 = vmatpush1.msra.mxu0 0.0
    %297 = vmatprep.subr.mxu0 0.0
    %298 = vmatpush1.msra.mxu0 0.0
    %299 = vmatprep.subr.mxu0 0.0
    %300 = vmatpush1.msra.mxu0 0.0
    %301 = vmatprep.subr.mxu0 0.0
    %302 = vmatpush1.msra.mxu0 0.0
    %303 = vmatprep.mubr.f32.mxu0 0.0
    %304 = vmatmul.mubr.f32.gmra.mrb[0].mxu0 %v237
    %v305 = vpop.f32.mrb[0].mxu0
    %v306 = vadd.f32 0.0, %v305
    %v307 = vpop.f32.mrb[0].mxu0
    %308 = vdwg.mxu0
    %v310 = vsel %vm215, %v227, 0
    %312 = vmatprep.subr.mxu0 0.0
    %313 = vmatpush1.msra.mxu0 %v235
    %314 = vmatprep.subr.mxu0 0.0
    %315 = vmatpush1.msra.mxu0 0.0
    %316 = vmatprep.subr.mxu0 0.0
    %317 = vmatpush1.msra.mxu0 0.0
    %318 = vmatprep.subr.mxu0 0.0
    %319 = vmatpush1.msra.mxu0 0.0
    %320 = vmatprep.subr.mxu0 0.0
    %321 = vmatpush1.msra.mxu0 0.0
    %322 = vmatprep.subr.mxu0 0.0
    %323 = vmatpush1.msra.mxu0 0.0
    %324 = vmatprep.subr.mxu0 0.0
    %325 = vmatpush1.msra.mxu0 0.0
    %326 = vmatprep.subr.mxu0 0.0
    %327 = vmatpush1.msra.mxu0 0.0
    %328 = vmatprep.subr.mxu0 0.0
    %329 = vmatpush1.msra.mxu0 0.0
    %330 = vmatprep.subr.mxu0 0.0
    %331 = vmatpush1.msra.mxu0 0.0
    %332 = vmatprep.subr.mxu0 0.0
    %333 = vmatpush1.msra.mxu0 0.0
    %334 = vmatprep.subr.mxu0 0.0
    %335 = vmatpush1.msra.mxu0 0.0
    %336 = vmatprep.subr.mxu0 0.0
    %337 = vmatpush1.msra.mxu0 0.0
    %338 = vmatprep.subr.mxu0 0.0
    %339 = vmatpush1.msra.mxu0 0.0
    %340 = vmatprep.subr.mxu0 0.0
    %341 = vmatpush1.msra.mxu0 0.0
    %342 = vmatprep.subr.mxu0 0.0
    %343 = vmatpush1.msra.mxu0 0.0
    %344 = vmatprep.subr.mxu0 0.0
    %345 = vmatpush1.msra.mxu0 0.0
    %346 = vmatprep.subr.mxu0 0.0
    %347 = vmatpush1.msra.mxu0 0.0
    %348 = vmatprep.subr.mxu0 0.0
    %349 = vmatpush1.msra.mxu0 0.0
    %350 = vmatprep.subr.mxu0 0.0
    %351 = vmatpush1.msra.mxu0 0.0
    %352 = vmatprep.subr.mxu0 0.0
    %353 = vmatpush1.msra.mxu0 0.0
    %354 = vmatprep.subr.mxu0 0.0
    %355 = vmatpush1.msra.mxu0 0.0
    %356 = vmatprep.subr.mxu0 0.0
    %357 = vmatpush1.msra.mxu0 0.0
    %358 = vmatprep.subr.mxu0 0.0
    %359 = vmatpush1.msra.mxu0 0.0
    %360 = vmatprep.subr.mxu0 0.0
    %361 = vmatpush1.msra.mxu0 0.0
    %362 = vmatprep.subr.mxu0 0.0
    %363 = vmatpush1.msra.mxu0 0.0
    %364 = vmatprep.subr.mxu0 0.0
    %365 = vmatpush1.msra.mxu0 0.0
    %366 = vmatprep.subr.mxu0 0.0
    %367 = vmatpush1.msra.mxu0 0.0
    %368 = vmatprep.subr.mxu0 0.0
    %369 = vmatpush1.msra.mxu0 0.0
    %370 = vmatprep.subr.mxu0 0.0
    %371 = vmatpush1.msra.mxu0 0.0
    %372 = vmatprep.subr.mxu0 0.0
    %373 = vmatpush1.msra.mxu0 0.0
    %374 = vmatprep.subr.mxu0 0.0
    %375 = vmatpush1.msra.mxu0 0.0
    %376 = vmatprep.mubr.f32.mxu0 0.0
    %377 = vmatmul.mubr.f32.gmra.mrb[0].mxu0 %v310
    %v378 = vpop.f32.mrb[0].mxu0
    %v379 = vadd.f32 0.0, %v378
    %v380 = vpop.f32.mrb[0].mxu0
    %381 = vdwg.mxu0
    %v382 = vrcp.pop %v230
    %v383 = vrcp.pop %v233
    %v384 = vmul.f32 %v306, %v382
    %v385 = vmul.f32 %v379, %v383
    %386 = vst.msk [vmem:[#allocation8] sm:$0xff] %vm60, %v384
    %387 = vst.msk [vmem:[#allocation8 + $0x8] sm:$0xff] %vm60, %v385
    // Predicated region
    $region26: #{tpu_custom_call.1} parent=1 // pred_check
      _
    $region27: #{tpu_custom_call.1} parent=1 // pred_check_branch
      %389 = sbr.rel (0) target = $region29
    $region28: #{tpu_custom_call.1} parent=1 // pred_region
      %s391 = ssub.s32 256, 256
      %392 = vsyncadd [#allocation4], %s391
      %s393 = sshll.u32 [#allocation8], 4
      %s394 = int_to_ptr.vmem [resolvable:$true] %s393
      %399 = dma.vmem_to_hbm [thread:$0]  %s394, 256, %s3, [#allocation4], 128, 128, 8
    $region29: #{tpu_custom_call.1} parent=1 // pred_fallthru
      _
    // Predicated region
    $region30: #{tpu_custom_call.1} parent=1 // pred_check
      _
    $region31: #{tpu_custom_call.1} parent=1 // pred_check_branch
      %401 = sbr.rel (0) target = $region33
    $region32: #{tpu_custom_call.1} parent=1 // pred_region
      %402 = dma.done [#allocation4], 256
    $region33: #{tpu_custom_call.1} parent=1 // pred_fallthru
      _
    %403 = vsyncpa [#allocation3], 1
    %404 = vsyncpa [#allocation6], 1
    %405 = vsyncpa [#allocation4], 1

</llo_original>
